<compile_context>
chip_gen: v7x
topology: tpu7x:2x2x1
jax: 0.10.0
libtpu: 0.0.40
codegen_flags: <defaults>
</compile_context>

<pallas_src>
import jax
import jax.numpy as jnp
from jax.experimental import pallas as pl
from jax.experimental.pallas import tpu as pltpu

IN, HID, OUT = 4, 10, 2          # logical PyTorch feature sizes (no HBM padding)
MAX_TILE_B = 32768               # max batch lanes per grid step


# ---------------------------------------------------------------------------
# Kernel
# ---------------------------------------------------------------------------
def mlp_kernel(x_ref, w1_ref, b1_ref, w2_ref, b2_ref, w3_ref, b3_ref, o_ref):
    """One batch tile.  Activations are (features, batch): the 128-wide lane
    axis carries the batch so every matmul / VPU op / store is lane-dense; the
    tiny feature dims sit on sublanes and are padded only inside VMEM."""
    x = x_ref[...]                                               # (IN, tb)

    # fc1 + relu : (HID, IN) @ (IN, tb) -> (HID, tb)
    h = jnp.dot(w1_ref[...], x, preferred_element_type=jnp.float32)
    h = jnp.maximum(h + b1_ref[...], 0.0)

    # fc2 + relu : (HID, HID) @ (HID, tb)
    h = jnp.dot(w2_ref[...], h, preferred_element_type=jnp.float32)
    h = jnp.maximum(h + b2_ref[...], 0.0)

    # fc3 (no activation) : (OUT, HID) @ (HID, tb)
    o = jnp.dot(w3_ref[...], h, preferred_element_type=jnp.float32) + b3_ref[...]
    o_ref[...] = o.astype(o_ref.dtype)


# ---------------------------------------------------------------------------
# Tiling / wrappers
# ---------------------------------------------------------------------------
def _round_up(n, m):
    return ((n + m - 1) // m) * m


def _pick_tile(batch, max_tile=MAX_TILE_B):
    """Batch tile for batch >= 128: a multiple of 128 lanes, <= max_tile, and
    chosen so the tile count is even whenever the batch is split (balances
    v7x's two TensorCores under dimension_semantics=('parallel',))."""
    n_pairs = pl.cdiv(batch, 2 * max_tile)                # >= 1
    tb = _round_up(pl.cdiv(batch, 2 * n_pairs), 128)
    return min(tb, max_tile)


def _pallas_mlp(x_fb, params, tb):
    """x_fb: (IN, B) feature-major, tb: batch tile (multiple of 128, <= B)."""
    w1, b1, w2, b2, w3, b3 = params
    batch = x_fb.shape[1]
    grid = pl.cdiv(batch, tb)          # ragged final block handled by Pallas

    flops = 2 * batch * (IN * HID + HID * HID + HID * OUT)
    param_bytes = sum(int(p.size) * p.dtype.itemsize for p in params)
    bytes_accessed = int((IN + OUT) * batch * x_fb.dtype.itemsize + param_bytes)

    def const_spec(shape):
        # Resident operand: constant index map -> stays in VMEM across steps.
        return pl.BlockSpec(shape, lambda i: (0, 0))

    return pl.pallas_call(
        mlp_kernel,
        out_shape=jax.ShapeDtypeStruct((OUT, batch), x_fb.dtype),
        grid=(grid,),
        in_specs=[
            pl.BlockSpec((IN, tb), lambda i: (0, i)),      # x tile (streamed)
            const_spec(w1.shape), const_spec(b1.shape),    # fc1
            const_spec(w2.shape), const_spec(b2.shape),    # fc2
            const_spec(w3.shape), const_spec(b3.shape),    # fc3
        ],
        out_specs=pl.BlockSpec((OUT, tb), lambda i: (0, i)),
        compiler_params=pltpu.CompilerParams(
            dimension_semantics=("parallel",),             # megacore on v7x
            vmem_limit_bytes=32 * 1024 * 1024,
        ),
        cost_estimate=pl.CostEstimate(
            flops=flops, transcendentals=0, bytes_accessed=bytes_accessed),
    )(x_fb, w1, b1, w2, b2, w3, b3)


def mlp_forward_fb(x_fb, params, max_tile=MAX_TILE_B):
    """Feature-major forward (production path): x_fb (IN, B) -> (OUT, B).
    No host-side relayout or padding for B >= 128."""
    batch = x_fb.shape[1]
    if batch < 128:
        # Tiny batch: pad to one 128-lane tile (negligible at this size).
        xp = jnp.zeros((IN, 128), x_fb.dtype).at[:, :batch].set(x_fb)
        return _pallas_mlp(xp, params, tb=128)[:, :batch]
    return _pallas_mlp(x_fb, params, _pick_tile(batch, max_tile))


def mlp_forward(x, params, small_batch_threshold=1024):
    """PyTorch-semantics forward: x (B, IN) -> (B, OUT).

    For tiny batches a single XLA fusion beats any custom-call launch, so we
    bypass Pallas.  For larger batches we transpose to the lane-dense
    feature-major layout around the kernel; production code should instead use
    mlp_forward_fb end-to-end so these two relayout ops disappear entirely.
    """
    batch = x.shape[0]
    if batch < small_batch_threshold:
        w1, b1, w2, b2, w3, b3 = params
        h = jnp.maximum(x @ w1.T + b1[:, 0], 0.0)
        h = jnp.maximum(h @ w2.T + b2[:, 0], 0.0)
        return h @ w3.T + b3[:, 0]
    return mlp_forward_fb(x.T, params).T


# ---------------------------------------------------------------------------
# Parameters (match nn.Linear default init; PyTorch (out, in) layout)
# ---------------------------------------------------------------------------
def init_raw_params(key):
    def linear(k, fan_in, fan_out):
        kw, kb = jax.random.split(k)
        bound = 1.0 / (fan_in ** 0.5)
        w = jax.random.uniform(kw, (fan_out, fan_in), jnp.float32, -bound, bound)
        b = jax.random.uniform(kb, (fan_out,), jnp.float32, -bound, bound)
        return w, b

    k1, k2, k3 = jax.random.split(key, 3)
    return (linear(k1, IN, HID), linear(k2, HID, HID), linear(k3, HID, OUT))


def kernel_params(raw):
    """One-time prep: weights stay at logical (out, in) sizes; biases become
    (out, 1) columns so they broadcast along the lane (batch) axis."""
    (w1, b1), (w2, b2), (w3, b3) = raw
    return (w1, b1.reshape(HID, 1), w2, b2.reshape(HID, 1), w3, b3.reshape(OUT, 1))


def reference_forward(x, raw):
    (w1, b1), (w2, b2), (w3, b3) = raw
    h = jnp.maximum(jnp.dot(x, w1.T, precision="highest") + b1, 0.0)
    h = jnp.maximum(jnp.dot(h, w2.T, precision="highest") + b2, 0.0)
    return jnp.dot(h, w3.T, precision="highest") + b3


# TODO(synk): optim.Adam in the PyTorch module is training state, not part of
# the forward pass, so it is intentionally not implemented here.

if __name__ == "__main__":
    key = jax.random.PRNGKey(0)
    kx, kp = jax.random.split(key)

    raw = init_raw_params(kp)
    params = kernel_params(raw)

    # Tolerance note: the kernel's f32 MXU matmuls use default precision; with
    # K <= 10 the error vs. the highest-precision reference is << 1e-4.
    TOL = dict(atol=1e-4, rtol=1e-4)

    # 1) Pallas path, feature-major input; B not a multiple of the tile so both
    #    the even grid (grid=2, tb=512) and ragged-final-block handling run.
    B1 = 1000
    x1 = jax.random.normal(kx, (IN, B1), dtype=jnp.float32)      # (features, batch)
    out1 = mlp_forward_fb(x1, params)
    jax.block_until_ready(out1)
    ref1 = reference_forward(x1.T, raw).T
    assert out1.shape == (OUT, B1), out1.shape
    assert jnp.allclose(out1, ref1, **TOL), "mismatch vs reference (B=1000)"

    # 2) Pallas path, tile-aligned batch (tb=128, grid=2, no ragged block).
    B2 = 256
    x2 = jax.random.normal(jax.random.fold_in(kx, 1), (IN, B2), dtype=jnp.float32)
    out2 = mlp_forward_fb(x2, params)
    jax.block_until_ready(out2)
    ref2 = reference_forward(x2.T, raw).T
    assert out2.shape == (OUT, B2), out2.shape
    assert jnp.allclose(out2, ref2, **TOL), "mismatch vs reference (B=256)"

    # 3) PyTorch-layout wrapper at the module's natural tiny scale (B=8);
    #    dispatches to the fused XLA path per the perf review.
    B3 = 8
    x3 = jax.random.normal(jax.random.fold_in(kx, 2), (B3, IN), dtype=jnp.float32)
    out3 = mlp_forward(x3, params)
    jax.block_until_ready(out3)
    ref3 = reference_forward(x3, raw)
    assert out3.shape == (B3, OUT), out3.shape
    assert jnp.allclose(out3, ref3, **TOL), "mismatch vs reference (B=8)"

    print("KERNEL_OK")
</pallas_src>

<mosaic_0001>
module attributes {stable_mosaic.version = 11 : i64} {
  func.func @mlp_kernel(%arg0: i32, %arg1: memref<4x512xf32, #tpu.memory_space<vmem>>, %arg2: memref<10x4xf32, #tpu.memory_space<vmem>>, %arg3: memref<10x1xf32, #tpu.memory_space<vmem>>, %arg4: memref<10x10xf32, #tpu.memory_space<vmem>>, %arg5: memref<10x1xf32, #tpu.memory_space<vmem>>, %arg6: memref<2x10xf32, #tpu.memory_space<vmem>>, %arg7: memref<2x1xf32, #tpu.memory_space<vmem>>, %arg8: memref<2x512xf32, #tpu.memory_space<vmem>>) attributes {dimension_semantics = [#tpu.dimension_semantics<parallel>], iteration_bounds = array<i64: 2>, scalar_prefetch = 0 : i64, scratch_operands = 0 : i64, tpu.core_type = #tpu.core_type<tc>, window_params = [{transform_indices = @transform_0, window_bounds = array<i64: 4, 512>}, {pipeline_mode = #tpu.pipeline_mode<synchronous>, transform_indices = @transform_1, window_bounds = array<i64: 10, 4>}, {pipeline_mode = #tpu.pipeline_mode<synchronous>, transform_indices = @transform_2, window_bounds = array<i64: 10, 1>}, {pipeline_mode = #tpu.pipeline_mode<synchronous>, transform_indices = @transform_3, window_bounds = array<i64: 10, 10>}, {pipeline_mode = #tpu.pipeline_mode<synchronous>, transform_indices = @transform_4, window_bounds = array<i64: 10, 1>}, {pipeline_mode = #tpu.pipeline_mode<synchronous>, transform_indices = @transform_5, window_bounds = array<i64: 2, 10>}, {pipeline_mode = #tpu.pipeline_mode<synchronous>, transform_indices = @transform_6, window_bounds = array<i64: 2, 1>}, {transform_indices = @transform_7, window_bounds = array<i64: 2, 512>}]} {
    %c0 = arith.constant 0 : index
    %c0_0 = arith.constant 0 : index
    %0 = vector.load %arg1[%c0, %c0_0] : memref<4x512xf32, #tpu.memory_space<vmem>>, vector<4x512xf32>
    %c0_1 = arith.constant 0 : index
    %c0_2 = arith.constant 0 : index
    %1 = vector.load %arg2[%c0_1, %c0_2] : memref<10x4xf32, #tpu.memory_space<vmem>>, vector<10x4xf32>
    %cst = arith.constant dense<0.000000e+00> : vector<10x512xf32>
    %2 = tpu.matmul %1, %0, %cst {dimension_numbers = #tpu.dot_dimension_numbers<[1], [0], [0], [1], [0, 0, 1, 1], [], []>} : vector<10x4xf32>, vector<4x512xf32>, vector<10x512xf32> -> vector<10x512xf32>
    %c0_3 = arith.constant 0 : index
    %c0_4 = arith.constant 0 : index
    %3 = vector.load %arg3[%c0_3, %c0_4] : memref<10x1xf32, #tpu.memory_space<vmem>>, vector<10x1xf32>
    %4 = vector.broadcast %3 : vector<10x1xf32> to vector<10x512xf32>
    %5 = arith.addf %2, %4 : vector<10x512xf32>
    %cst_5 = arith.constant 0.000000e+00 : f32
    %6 = vector.broadcast %cst_5 : f32 to vector<10x512xf32>
    %7 = arith.maximumf %5, %6 : vector<10x512xf32>
    %c0_6 = arith.constant 0 : index
    %c0_7 = arith.constant 0 : index
    %8 = vector.load %arg4[%c0_6, %c0_7] : memref<10x10xf32, #tpu.memory_space<vmem>>, vector<10x10xf32>
    %cst_8 = arith.constant dense<0.000000e+00> : vector<10x512xf32>
    %9 = tpu.matmul %8, %7, %cst_8 {dimension_numbers = #tpu.dot_dimension_numbers<[1], [0], [0], [1], [0, 0, 1, 1], [], []>} : vector<10x10xf32>, vector<10x512xf32>, vector<10x512xf32> -> vector<10x512xf32>
    %c0_9 = arith.constant 0 : index
    %c0_10 = arith.constant 0 : index
    %10 = vector.load %arg5[%c0_9, %c0_10] : memref<10x1xf32, #tpu.memory_space<vmem>>, vector<10x1xf32>
    %11 = vector.broadcast %10 : vector<10x1xf32> to vector<10x512xf32>
    %12 = arith.addf %9, %11 : vector<10x512xf32>
    %cst_11 = arith.constant 0.000000e+00 : f32
    %13 = vector.broadcast %cst_11 : f32 to vector<10x512xf32>
    %14 = arith.maximumf %12, %13 : vector<10x512xf32>
    %c0_12 = arith.constant 0 : index
    %c0_13 = arith.constant 0 : index
    %15 = vector.load %arg6[%c0_12, %c0_13] : memref<2x10xf32, #tpu.memory_space<vmem>>, vector<2x10xf32>
    %cst_14 = arith.constant dense<0.000000e+00> : vector<2x512xf32>
    %16 = tpu.matmul %15, %14, %cst_14 {dimension_numbers = #tpu.dot_dimension_numbers<[1], [0], [0], [1], [0, 0, 1, 1], [], []>} : vector<2x10xf32>, vector<10x512xf32>, vector<2x512xf32> -> vector<2x512xf32>
    %c0_15 = arith.constant 0 : index
    %c0_16 = arith.constant 0 : index
    %17 = vector.load %arg7[%c0_15, %c0_16] : memref<2x1xf32, #tpu.memory_space<vmem>>, vector<2x1xf32>
    %18 = vector.broadcast %17 : vector<2x1xf32> to vector<2x512xf32>
    %19 = arith.addf %16, %18 : vector<2x512xf32>
    %c0_17 = arith.constant 0 : index
    %c0_18 = arith.constant 0 : index
    %20 = vector.load %arg8[%c0_17, %c0_18] : memref<2x512xf32, #tpu.memory_space<vmem>>, vector<2x512xf32>
    tpu.vector_store %arg8[%c0_17, %c0_18], %19 {strides = array<i32>} : memref<2x512xf32, #tpu.memory_space<vmem>>, vector<2x512xf32>,
    return
  }
  func.func @transform_0(%arg0: i32) -> (i32, i32) {
    %c0_i32 = arith.constant 0 : i32
    %c0_i32_0 = arith.constant 0 : i32
    return %c0_i32, %arg0 : i32, i32
  }
  func.func @transform_1(%arg0: i32) -> (i32, i32) {
    %c0_i32 = arith.constant 0 : i32
    %c0_i32_0 = arith.constant 0 : i32
    %c0_i32_1 = arith.constant 0 : i32
    return %c0_i32, %c0_i32_0 : i32, i32
  }
  func.func @transform_2(%arg0: i32) -> (i32, i32) {
    %c0_i32 = arith.constant 0 : i32
    %c0_i32_0 = arith.constant 0 : i32
    %c0_i32_1 = arith.constant 0 : i32
    return %c0_i32, %c0_i32_0 : i32, i32
  }
  func.func @transform_3(%arg0: i32) -> (i32, i32) {
    %c0_i32 = arith.constant 0 : i32
    %c0_i32_0 = arith.constant 0 : i32
    %c0_i32_1 = arith.constant 0 : i32
    return %c0_i32, %c0_i32_0 : i32, i32
  }
  func.func @transform_4(%arg0: i32) -> (i32, i32) {
    %c0_i32 = arith.constant 0 : i32
    %c0_i32_0 = arith.constant 0 : i32
    %c0_i32_1 = arith.constant 0 : i32
    return %c0_i32, %c0_i32_0 : i32, i32
  }
  func.func @transform_5(%arg0: i32) -> (i32, i32) {
    %c0_i32 = arith.constant 0 : i32
    %c0_i32_0 = arith.constant 0 : i32
    %c0_i32_1 = arith.constant 0 : i32
    return %c0_i32, %c0_i32_0 : i32, i32
  }
  func.func @transform_6(%arg0: i32) -> (i32, i32) {
    %c0_i32 = arith.constant 0 : i32
    %c0_i32_0 = arith.constant 0 : i32
    %c0_i32_1 = arith.constant 0 : i32
    return %c0_i32, %c0_i32_0 : i32, i32
  }
  func.func @transform_7(%arg0: i32) -> (i32, i32) {
    %c0_i32 = arith.constant 0 : i32
    %c0_i32_0 = arith.constant 0 : i32
    return %c0_i32, %arg0 : i32, i32
  }
}

</mosaic_0001>

<llo_original>
// kernel: tpu_custom_call.1
$region0: #{tpu_custom_call.1}
  #allocation0 [shape = 'u32[]', space=smem, size = 0x4, offset = 0x4, fixed_abs, tag = 'smem constant byte address 0x4 - core index']
  #allocation1 [shape = 'u32[144,128]{1,0:T(1,128)}', space=vmem, size = 0x12000, scoped, tag = 'internal scratch']
  %s0 = inlined_call_operand.vmem [shape: f32[4,1000], index: 0, kind: input, shape index: {}]
  %s1 = inlined_call_operand.vmem [shape: f32[10,4], index: 1, kind: input, shape index: {}]
  %s2 = inlined_call_operand.vmem [shape: f32[10,1], index: 2, kind: input, shape index: {}]
  %s3 = inlined_call_operand.vmem [shape: f32[10,10], index: 3, kind: input, shape index: {}]
  %s4 = inlined_call_operand.vmem [shape: f32[10,1], index: 4, kind: input, shape index: {}]
  %s5 = inlined_call_operand.vmem [shape: f32[2,10], index: 5, kind: input, shape index: {}]
  %s6 = inlined_call_operand.vmem [shape: f32[2,1], index: 6, kind: input, shape index: {}]
  %s7 = inlined_call_operand.hbm [shape: f32[2,1000], index: 7, kind: output, shape index: {}]
  %s8 = sld [smem:[#allocation0]]
  $region61: #{tpu_custom_call.1} parent=0
    _
  %s10 = ssub.s32 1, %s8
  %s11 = scalar_select 0, %s10, %s8
  $region1: #{tpu_custom_call.1} parent=0
    #allocation2 [shape = 'u8[8192]{0}', space=vmem, size = 0x2000, scoped, tag = 'output window, operand 0']
    #allocation3 [shape = 's32[2]{0}', space=sflag, size = 0x8, scoped, tag = 'scoped memory for tpu_custom_call.1']
    %12 = vsyncpa [#allocation3], 0
    %s13 = scalar_lea.sflag [#allocation3], 1
    %14 = vsyncpa %s13, 0
    loop: start=0, step=1, limit=4
    $region2: #{tpu_custom_call.1} parent=1 // loop_pre_header
      _
    $region3: #{tpu_custom_call.1} parent=1 // loop_header
      %s16 = sphi 0, %s20
      %p17 = scmp.ge.s32.totalorder %s16, 4
      %s26 = sphi 0, %s28
      %s29 = sphi 0, %s26
      %s30 = sphi 0, %s29
      %s46 = sphi 0, %s30
      %s50 = sphi 0, %s50
      %s52 = sphi 0, %s50
      %s53 = sphi 0, %s52
      %s67 = sphi 0, %s53
      %s71 = sphi 0, %s71
      %s73 = sphi 0, %s71
      %s74 = sphi 0, %s73
      %s88 = sphi 0, %s74
      %s92 = sphi 0, %s92
      %s94 = sphi 0, %s92
      %s95 = sphi 0, %s94
      %s109 = sphi 0, %s95
      %s113 = sphi 0, %s113
      %s115 = sphi 0, %s113
      %s116 = sphi 0, %s115
      %s130 = sphi 0, %s116
      %s134 = sphi 0, %s134
      %s136 = sphi 0, %s134
      %s137 = sphi 0, %s136
      %s151 = sphi 0, %s137
      %s155 = sphi 0, %s155
      %s157 = sphi 0, %s155
      %s158 = sphi 0, %s157
      %s172 = sphi 0, %s158
      %s178 = sphi 0, %s180
      %s181 = sphi 0, %s178
      %s182 = sphi 0, %s181
      %s198 = sphi 0, %s182
    $region4: #{tpu_custom_call.1} parent=1 // loop_header_branch
      %19 = sbr.rel (%p17) target = $region8
    $region5: #{tpu_custom_call.1} parent=1 // loop_body
      %s21 = ssub.s32 %s16, 1
      %s22 = ssub.s32 %s16, 2
      %s23 = sadd.s32 %s16, 1
      %s24 = ssub.s32 %s16, %s23
      %p25 = scmp.eq.s32.totalorder %s24, 0
      %s27 = sadd.s32 %s26, 1
      %s28 = scalar_select %p25, %s26, %s27
      %p31 = pneg %p25
      %p32 = scmp.eq.s32.totalorder %s16, 1
      %p33 = por %p31, %p32
      %p34 = scmp.ne.s32.totalorder %s26, %s29
      %p35 = scmp.eq.s32.totalorder %s16, 0
      %p36 = por %p34, %p35
      %p37 = scmp.ne.s32.totalorder %s26, %s29
      %p38 = scmp.eq.s32.totalorder %s21, 1
      %p39 = por %p37, %p38
      %p40 = scmp.ne.s32.totalorder %s29, %s30
      %p41 = scmp.eq.s32.totalorder %s21, 0
      %p42 = por %p40, %p41
      %p43 = scmp.ne.s32.totalorder %s29, %s30
      %p44 = scmp.eq.s32.totalorder %s22, 1
      %p45 = por %p43, %p44
      %p47 = scmp.ne.s32.totalorder %s30, %s46
      %p48 = scmp.eq.s32.totalorder %s22, 0
      %p49 = por %p47, %p48
      %s51 = sadd.s32 %s50, 1
      %p54 = scmp.eq.s32.totalorder %s16, 1
      %p55 = scmp.ne.s32.totalorder %s50, %s52
      %p56 = scmp.eq.s32.totalorder %s16, 0
      %p57 = por %p55, %p56
      %p58 = scmp.ne.s32.totalorder %s50, %s52
      %p59 = scmp.eq.s32.totalorder %s21, 1
      %p60 = por %p58, %p59
      %p61 = scmp.ne.s32.totalorder %s52, %s53
      %p62 = scmp.eq.s32.totalorder %s21, 0
      %p63 = por %p61, %p62
      %p64 = scmp.ne.s32.totalorder %s52, %s53
      %p65 = scmp.eq.s32.totalorder %s22, 1
      %p66 = por %p64, %p65
      %p68 = scmp.ne.s32.totalorder %s53, %s67
      %p69 = scmp.eq.s32.totalorder %s22, 0
      %p70 = por %p68, %p69
      %s72 = sadd.s32 %s71, 1
      %p75 = scmp.eq.s32.totalorder %s16, 1
      %p76 = scmp.ne.s32.totalorder %s71, %s73
      %p77 = scmp.eq.s32.totalorder %s16, 0
      %p78 = por %p76, %p77
      %p79 = scmp.ne.s32.totalorder %s71, %s73
      %p80 = scmp.eq.s32.totalorder %s21, 1
      %p81 = por %p79, %p80
      %p82 = scmp.ne.s32.totalorder %s73, %s74
      %p83 = scmp.eq.s32.totalorder %s21, 0
      %p84 = por %p82, %p83
      %p85 = scmp.ne.s32.totalorder %s73, %s74
      %p86 = scmp.eq.s32.totalorder %s22, 1
      %p87 = por %p85, %p86
      %p89 = scmp.ne.s32.totalorder %s74, %s88
      %p90 = scmp.eq.s32.totalorder %s22, 0
      %p91 = por %p89, %p90
      %s93 = sadd.s32 %s92, 1
      %p96 = scmp.eq.s32.totalorder %s16, 1
      %p97 = scmp.ne.s32.totalorder %s92, %s94
      %p98 = scmp.eq.s32.totalorder %s16, 0
      %p99 = por %p97, %p98
      %p100 = scmp.ne.s32.totalorder %s92, %s94
      %p101 = scmp.eq.s32.totalorder %s21, 1
      %p102 = por %p100, %p101
      %p103 = scmp.ne.s32.totalorder %s94, %s95
      %p104 = scmp.eq.s32.totalorder %s21, 0
      %p105 = por %p103, %p104
      %p106 = scmp.ne.s32.totalorder %s94, %s95
      %p107 = scmp.eq.s32.totalorder %s22, 1
      %p108 = por %p106, %p107
      %p110 = scmp.ne.s32.totalorder %s95, %s109
      %p111 = scmp.eq.s32.totalorder %s22, 0
      %p112 = por %p110, %p111
      %s114 = sadd.s32 %s113, 1
      %p117 = scmp.eq.s32.totalorder %s16, 1
      %p118 = scmp.ne.s32.totalorder %s113, %s115
      %p119 = scmp.eq.s32.totalorder %s16, 0
      %p120 = por %p118, %p119
      %p121 = scmp.ne.s32.totalorder %s113, %s115
      %p122 = scmp.eq.s32.totalorder %s21, 1
      %p123 = por %p121, %p122
      %p124 = scmp.ne.s32.totalorder %s115, %s116
      %p125 = scmp.eq.s32.totalorder %s21, 0
      %p126 = por %p124, %p125
      %p127 = scmp.ne.s32.totalorder %s115, %s116
      %p128 = scmp.eq.s32.totalorder %s22, 1
      %p129 = por %p127, %p128
      %p131 = scmp.ne.s32.totalorder %s116, %s130
      %p132 = scmp.eq.s32.totalorder %s22, 0
      %p133 = por %p131, %p132
      %s135 = sadd.s32 %s134, 1
      %p138 = scmp.eq.s32.totalorder %s16, 1
      %p139 = scmp.ne.s32.totalorder %s134, %s136
      %p140 = scmp.eq.s32.totalorder %s16, 0
      %p141 = por %p139, %p140
      %p142 = scmp.ne.s32.totalorder %s134, %s136
      %p143 = scmp.eq.s32.totalorder %s21, 1
      %p144 = por %p142, %p143
      %p145 = scmp.ne.s32.totalorder %s136, %s137
      %p146 = scmp.eq.s32.totalorder %s21, 0
      %p147 = por %p145, %p146
      %p148 = scmp.ne.s32.totalorder %s136, %s137
      %p149 = scmp.eq.s32.totalorder %s22, 1
      %p150 = por %p148, %p149
      %p152 = scmp.ne.s32.totalorder %s137, %s151
      %p153 = scmp.eq.s32.totalorder %s22, 0
      %p154 = por %p152, %p153
      %s156 = sadd.s32 %s155, 1
      %p159 = scmp.eq.s32.totalorder %s16, 1
      %p160 = scmp.ne.s32.totalorder %s155, %s157
      %p161 = scmp.eq.s32.totalorder %s16, 0
      %p162 = por %p160, %p161
      %p163 = scmp.ne.s32.totalorder %s155, %s157
      %p164 = scmp.eq.s32.totalorder %s21, 1
      %p165 = por %p163, %p164
      %p166 = scmp.ne.s32.totalorder %s157, %s158
      %p167 = scmp.eq.s32.totalorder %s21, 0
      %p168 = por %p166, %p167
      %p169 = scmp.ne.s32.totalorder %s157, %s158
      %p170 = scmp.eq.s32.totalorder %s22, 1
      %p171 = por %p169, %p170
      %p173 = scmp.ne.s32.totalorder %s158, %s172
      %p174 = scmp.eq.s32.totalorder %s22, 0
      %p175 = por %p173, %p174
      %s176 = ssub.s32 %s16, %s23
      %p177 = scmp.eq.s32.totalorder %s176, 0
      %s179 = sadd.s32 %s178, 1
      %s180 = scalar_select %p177, %s178, %s179
      %p183 = pneg %p177
      %p184 = scmp.eq.s32.totalorder %s16, 1
      %p185 = por %p183, %p184
      %p186 = scmp.ne.s32.totalorder %s178, %s181
      %p187 = scmp.eq.s32.totalorder %s16, 0
      %p188 = por %p186, %p187
      %p189 = scmp.ne.s32.totalorder %s178, %s181
      %p190 = scmp.eq.s32.totalorder %s21, 1
      %p191 = por %p189, %p190
      %p192 = scmp.ne.s32.totalorder %s181, %s182
      %p193 = scmp.eq.s32.totalorder %s21, 0
      %p194 = por %p192, %p193
      %p195 = scmp.ne.s32.totalorder %s181, %s182
      %p196 = scmp.eq.s32.totalorder %s22, 1
      %p197 = por %p195, %p196
      %p199 = scmp.ne.s32.totalorder %s182, %s198
      %p200 = scmp.eq.s32.totalorder %s22, 0
      %p201 = por %p199, %p200
      %p202 = scmp.le.s32.totalorder 1, %s16
      %p203 = scmp.lt.s32.totalorder %s16, 3
      %p204 = pnand %p202, %p203
      %p205 = pneg %p204
      // Predicated region
      $region9: #{tpu_custom_call.1} parent=5 // pred_check
        _
      $region10: #{tpu_custom_call.1} parent=5 // pred_check_branch
        %207 = sbr.rel (%p204) target = $region12
      $region11: #{tpu_custom_call.1} parent=5 // pred_region
        %s208 = ssub.s32 %s16, 1
        // Predicated region
        $region13: #{tpu_custom_call.1} parent=11 // pred_check
          %p209 = pneg %p63
        $region14: #{tpu_custom_call.1} parent=11 // pred_check_branch
          %211 = sbr.rel (%p209) target = $region16
        $region15: #{tpu_custom_call.1} parent=11 // pred_region
          _
        $region16: #{tpu_custom_call.1} parent=11 // pred_fallthru
          _
        // Predicated region
        $region17: #{tpu_custom_call.1} parent=11 // pred_check
          %p212 = pneg %p84
        $region18: #{tpu_custom_call.1} parent=11 // pred_check_branch
          %214 = sbr.rel (%p212) target = $region20
        $region19: #{tpu_custom_call.1} parent=11 // pred_region
          _
        $region20: #{tpu_custom_call.1} parent=11 // pred_fallthru
          _
        // Predicated region
        $region21: #{tpu_custom_call.1} parent=11 // pred_check
          %p215 = pneg %p105
        $region22: #{tpu_custom_call.1} parent=11 // pred_check_branch
          %217 = sbr.rel (%p215) target = $region24
        $region23: #{tpu_custom_call.1} parent=11 // pred_region
          _
        $region24: #{tpu_custom_call.1} parent=11 // pred_fallthru
          _
        // Predicated region
        $region25: #{tpu_custom_call.1} parent=11 // pred_check
          %p218 = pneg %p126
        $region26: #{tpu_custom_call.1} parent=11 // pred_check_branch
          %220 = sbr.rel (%p218) target = $region28
        $region27: #{tpu_custom_call.1} parent=11 // pred_region
          _
        $region28: #{tpu_custom_call.1} parent=11 // pred_fallthru
          _
        // Predicated region
        $region29: #{tpu_custom_call.1} parent=11 // pred_check
          %p221 = pneg %p147
        $region30: #{tpu_custom_call.1} parent=11 // pred_check_branch
          %223 = sbr.rel (%p221) target = $region32
        $region31: #{tpu_custom_call.1} parent=11 // pred_region
          _
        $region32: #{tpu_custom_call.1} parent=11 // pred_fallthru
          _
        // Predicated region
        $region33: #{tpu_custom_call.1} parent=11 // pred_check
          %p224 = pneg %p168
        $region34: #{tpu_custom_call.1} parent=11 // pred_check_branch
          %226 = sbr.rel (%p224) target = $region36
        $region35: #{tpu_custom_call.1} parent=11 // pred_region
          _
        $region36: #{tpu_custom_call.1} parent=11 // pred_fallthru
          _
      $region12: #{tpu_custom_call.1} parent=5 // pred_fallthru
        _
      %p227 = scmp.lt.s32.totalorder %s16, 2
      // Predicated region
      $region37: #{tpu_custom_call.1} parent=5 // pred_check
        %p228 = pneg %p227
      $region38: #{tpu_custom_call.1} parent=5 // pred_check_branch
        %230 = sbr.rel (%p228) target = $region40
      $region39: #{tpu_custom_call.1} parent=5 // pred_region
        // Predicated region
        $region41: #{tpu_custom_call.1} parent=39 // pred_check
          %p231 = pneg %p36
        $region42: #{tpu_custom_call.1} parent=39 // pred_check_branch
          %233 = sbr.rel (%p231) target = $region44
        $region43: #{tpu_custom_call.1} parent=39 // pred_region
          %s234 = smul.u32 4, %s16
          %p235 = scmp.lt.s32.totalorder %s234, 7
          %s236 = scalar_select %p235, %s234, 7
          %s237 = smul.addr %s236, 4
          %s238 = scalar_lea.vmem %s0, %s237
          %s239 = smul.u32 4, %s16
        $region44: #{tpu_custom_call.1} parent=39 // pred_fallthru
          _
      $region40: #{tpu_custom_call.1} parent=5 // pred_fallthru
        _
      %p240 = scmp.le.s32.totalorder 1, %s16
      %p241 = scmp.lt.s32.totalorder %s16, 3
      %p242 = pnand %p240, %p241
      %p243 = pneg %p242
      // Predicated region
      $region45: #{tpu_custom_call.1} parent=5 // pred_check
        _
      $region46: #{tpu_custom_call.1} parent=5 // pred_check_branch
        %245 = sbr.rel (%p242) target = $region48
      $region47: #{tpu_custom_call.1} parent=5 // pred_region
        %s246 = ssub.s32 %s16, 1
        %s247 = smul.u32 4, %s21
        %p248 = scmp.lt.s32.totalorder %s247, 7
        %s249 = scalar_select %p248, %s247, 7
        %s250 = smul.addr %s249, 4
        %s251 = scalar_lea.vmem %s0, %s250
        %p252 = pneg %p42
        %p253 = pneg %p39
        %p254 = pneg %p63
        %p255 = pneg %p60
        %p256 = pneg %p84
        %p257 = pneg %p81
        %p258 = pneg %p105
        %p259 = pneg %p102
        %p260 = pneg %p126
        %p261 = pneg %p123
        %p262 = pneg %p147
        %p263 = pneg %p144
        %p264 = pneg %p168
        %p265 = pneg %p165
        %p266 = pneg %p194
        %p267 = pneg %p191
        %s268 = sand.u32 %s181, 1
        %s269 = scalar_lea.sflag [#allocation3], %s268
        %s270 = sand.u32 %s181, 1
        %s271 = smul.addr %s270, 8
        %s272 = scalar_lea.vmem [#allocation2], %s271
        %s273 = smul.u32 4, %s21
        %p274 = scmp.lt.s32.totalorder %s273, 7
        %s275 = scalar_select %p274, %s273, 7
        %s276 = smul.addr %s275, 4
        %s277 = scalar_lea.vmem %s0, %s276
        %s278 = smul.u32 4, %s21
        %s279 = smul.u32 4, %s21
        %v280 = vld [vmem:[%s277] sm:$0xff]
        %v281 = vld [vmem:[%s277 + $0x8] sm:$0xff]
        %v282 = vld [vmem:[%s1] sm:$0xff]
        %v283 = vld [vmem:[%s1 + $0x8] sm:$0x3]
        %v284 = vld [vmem:[%s2] sm:$0xff]
        %v285 = vld [vmem:[%s2 + $0x8] sm:$0x3]
        %287 = vset.pattern.permute.xlu0 0
        %288 = vperm.xlu0 %287, %v284
        %v289 = vpop.permute.xlu0 %288
        %292 = vset.pattern.permute.xlu0 0
        %293 = vperm.xlu0 %292, %v285
        %v294 = vpop.permute.xlu0 %293
        %v298 = vcombine.high %v280, %v280
        %v299 = vcombine.high %v281, %v281
        %vm300 = vcmask 31744
        %v302 = vsel %vm300, %v282, 0
        %v305 = vsel %vm300, %v283, 0
        %vm307 = vcmask 1043456
        %v308 = vsel %vm307, %v280, 0
        %v310 = vsel %vm307, %v298, 0
        %v312 = vsel %vm307, %v281, 0
        %v314 = vsel %vm307, %v299, 0
        %316 = vmatprep.subr.mxu0 %v310
        %317 = vmatpush1.msra.mxu0 %v308
        %318 = vmatprep.subr.mxu0 0.0
        %319 = vmatpush1.msra.mxu0 0.0
        %320 = vmatprep.subr.mxu0 0.0
        %321 = vmatpush1.msra.mxu0 0.0
        %322 = vmatprep.subr.mxu0 0.0
        %323 = vmatpush1.msra.mxu0 0.0
        %324 = vmatprep.subr.mxu0 0.0
        %325 = vmatpush1.msra.mxu0 0.0
        %326 = vmatprep.subr.mxu0 0.0
        %327 = vmatpush1.msra.mxu0 0.0
        %328 = vmatprep.subr.mxu0 0.0
        %329 = vmatpush1.msra.mxu0 0.0
        %330 = vmatprep.subr.mxu0 0.0
        %331 = vmatpush1.msra.mxu0 0.0
        %332 = vmatprep.subr.mxu0 0.0
        %333 = vmatpush1.msra.mxu0 0.0
        %334 = vmatprep.subr.mxu0 0.0
        %335 = vmatpush1.msra.mxu0 0.0
        %336 = vmatprep.subr.mxu0 0.0
        %337 = vmatpush1.msra.mxu0 0.0
        %338 = vmatprep.subr.mxu0 0.0
        %339 = vmatpush1.msra.mxu0 0.0
        %340 = vmatprep.subr.mxu0 0.0
        %341 = vmatpush1.msra.mxu0 0.0
        %342 = vmatprep.subr.mxu0 0.0
        %343 = vmatpush1.msra.mxu0 0.0
        %344 = vmatprep.subr.mxu0 0.0
        %345 = vmatpush1.msra.mxu0 0.0
        %346 = vmatprep.subr.mxu0 0.0
        %347 = vmatpush1.msra.mxu0 0.0
        %348 = vmatprep.subr.mxu0 0.0
        %349 = vmatpush1.msra.mxu0 0.0
        %350 = vmatprep.subr.mxu0 0.0
        %351 = vmatpush1.msra.mxu0 0.0
        %352 = vmatprep.subr.mxu0 0.0
        %353 = vmatpush1.msra.mxu0 0.0
        %354 = vmatprep.subr.mxu0 0.0
        %355 = vmatpush1.msra.mxu0 0.0
        %356 = vmatprep.subr.mxu0 0.0
        %357 = vmatpush1.msra.mxu0 0.0
        %358 = vmatprep.subr.mxu0 0.0
        %359 = vmatpush1.msra.mxu0 0.0
        %360 = vmatprep.subr.mxu0 0.0
        %361 = vmatpush1.msra.mxu0 0.0
        %362 = vmatprep.subr.mxu0 0.0
        %363 = vmatpush1.msra.mxu0 0.0
        %364 = vmatprep.subr.mxu0 0.0
        %365 = vmatpush1.msra.mxu0 0.0
        %366 = vmatprep.subr.mxu0 0.0
        %367 = vmatpush1.msra.mxu0 0.0
        %368 = vmatprep.subr.mxu0 0.0
        %369 = vmatpush1.msra.mxu0 0.0
        %370 = vmatprep.subr.mxu0 0.0
        %371 = vmatpush1.msra.mxu0 0.0
        %372 = vmatprep.subr.mxu0 0.0
        %373 = vmatpush1.msra.mxu0 0.0
        %374 = vmatprep.subr.mxu0 0.0
        %375 = vmatpush1.msra.mxu0 0.0
        %376 = vmatprep.subr.mxu0 0.0
        %377 = vmatpush1.msra.mxu0 0.0
        %378 = vmatprep.subr.mxu0 0.0
        %379 = vmatpush1.msra.mxu0 0.0
        %380 = vmatprep.mubr.f32.mxu0 0.0
        %381 = vmatmul.mubr.f32.gmra.mrb[0].mxu0 %v302
        %v382 = vpop.f32.mrb[0].mxu0
        %v383 = vadd.f32 %v289, %v382
        %v384 = vpop.f32.mrb[0].mxu0
        %v385 = vadd.f32 %v289, %v384
        %386 = vmatprep.mubr.f32.mxu0 0.0
        %387 = vmatmul.mubr.f32.gmra.mrb[0].mxu0 %v305
        %v388 = vpop.f32.mrb[0].mxu0
        %v389 = vadd.f32 %v294, %v388
        %v390 = vpop.f32.mrb[0].mxu0
        %v391 = vadd.f32 %v294, %v390
        %392 = vdwg.mxu0
        %393 = vmatprep.subr.mxu0 %v314
        %394 = vmatpush1.msra.mxu0 %v312
        %395 = vmatprep.subr.mxu0 0.0
        %396 = vmatpush1.msra.mxu0 0.0
        %397 = vmatprep.subr.mxu0 0.0
        %398 = vmatpush1.msra.mxu0 0.0
        %399 = vmatprep.subr.mxu0 0.0
        %400 = vmatpush1.msra.mxu0 0.0
        %401 = vmatprep.subr.mxu0 0.0
        %402 = vmatpush1.msra.mxu0 0.0
        %403 = vmatprep.subr.mxu0 0.0
        %404 = vmatpush1.msra.mxu0 0.0
        %405 = vmatprep.subr.mxu0 0.0
        %406 = vmatpush1.msra.mxu0 0.0
        %407 = vmatprep.subr.mxu0 0.0
        %408 = vmatpush1.msra.mxu0 0.0
        %409 = vmatprep.subr.mxu0 0.0
        %410 = vmatpush1.msra.mxu0 0.0
        %411 = vmatprep.subr.mxu0 0.0
        %412 = vmatpush1.msra.mxu0 0.0
        %413 = vmatprep.subr.mxu0 0.0
        %414 = vmatpush1.msra.mxu0 0.0
        %415 = vmatprep.subr.mxu0 0.0
        %416 = vmatpush1.msra.mxu0 0.0
        %417 = vmatprep.subr.mxu0 0.0
        %418 = vmatpush1.msra.mxu0 0.0
        %419 = vmatprep.subr.mxu0 0.0
        %420 = vmatpush1.msra.mxu0 0.0
        %421 = vmatprep.subr.mxu0 0.0
        %422 = vmatpush1.msra.mxu0 0.0
        %423 = vmatprep.subr.mxu0 0.0
        %424 = vmatpush1.msra.mxu0 0.0
        %425 = vmatprep.subr.mxu0 0.0
        %426 = vmatpush1.msra.mxu0 0.0
        %427 = vmatprep.subr.mxu0 0.0
        %428 = vmatpush1.msra.mxu0 0.0
        %429 = vmatprep.subr.mxu0 0.0
        %430 = vmatpush1.msra.mxu0 0.0
        %431 = vmatprep.subr.mxu0 0.0
        %432 = vmatpush1.msra.mxu0 0.0
        %433 = vmatprep.subr.mxu0 0.0
        %434 = vmatpush1.msra.mxu0 0.0
        %435 = vmatprep.subr.mxu0 0.0
        %436 = vmatpush1.msra.mxu0 0.0
        %437 = vmatprep.subr.mxu0 0.0
        %438 = vmatpush1.msra.mxu0 0.0
        %439 = vmatprep.subr.mxu0 0.0
        %440 = vmatpush1.msra.mxu0 0.0
        %441 = vmatprep.subr.mxu0 0.0
        %442 = vmatpush1.msra.mxu0 0.0
        %443 = vmatprep.subr.mxu0 0.0
        %444 = vmatpush1.msra.mxu0 0.0
        %445 = vmatprep.subr.mxu0 0.0
        %446 = vmatpush1.msra.mxu0 0.0
        %447 = vmatprep.subr.mxu0 0.0
        %448 = vmatpush1.msra.mxu0 0.0
        %449 = vmatprep.subr.mxu0 0.0
        %450 = vmatpush1.msra.mxu0 0.0
        %451 = vmatprep.subr.mxu0 0.0
        %452 = vmatpush1.msra.mxu0 0.0
        %453 = vmatprep.subr.mxu0 0.0
        %454 = vmatpush1.msra.mxu0 0.0
        %455 = vmatprep.subr.mxu0 0.0
        %456 = vmatpush1.msra.mxu0 0.0
        %457 = vmatprep.mubr.f32.mxu0 0.0
        %458 = vmatmul.mubr.f32.gmra.mrb[0].mxu0 %v302
        %v459 = vpop.f32.mrb[0].mxu0
        %v460 = vadd.f32 %v289, %v459
        %v461 = vpop.f32.mrb[0].mxu0
        %v462 = vadd.f32 %v289, %v461
        %463 = vmatprep.mubr.f32.mxu0 0.0
        %464 = vmatmul.mubr.f32.gmra.mrb[0].mxu0 %v305
        %v465 = vpop.f32.mrb[0].mxu0
        %v466 = vadd.f32 %v294, %v465
        %v467 = vpop.f32.mrb[0].mxu0
        %v468 = vadd.f32 %v294, %v467
        %469 = vdwg.mxu0
        %v470 = vmax.f32 %v383, 0.0
        %v471 = vmax.f32 %v385, 0.0
        %v472 = vmax.f32 %v460, 0.0
        %v473 = vmax.f32 %v462, 0.0
        %v474 = vmax.f32 %v389, 0.0
        %v475 = vmax.f32 %v391, 0.0
        %v476 = vmax.f32 %v466, 0.0
        %v477 = vmax.f32 %v468, 0.0
        %v478 = vld [vmem:[%s3] sm:$0xff]
        %v479 = vld [vmem:[%s3 + $0x8] sm:$0x3]
        %v480 = vld [vmem:[%s4] sm:$0xff]
        %v481 = vld [vmem:[%s4 + $0x8] sm:$0x3]
        %483 = vset.pattern.permute.xlu0 0
        %484 = vperm.xlu0 %483, %v480
        %v485 = vpop.permute.xlu0 %484
        %488 = vset.pattern.permute.xlu0 0
        %489 = vperm.xlu0 %488, %v481
        %v490 = vpop.permute.xlu0 %489
        %vm492 = vcmask 80896
        %v494 = vsel %vm492, %v478, 0
        %v497 = vsel %vm492, %v479, 0
        %vm499 = vcmask 1041408
        %v501 = vsel %vm499, %v474, 0
        %v504 = vsel %vm499, %v475, 0
        %v507 = vsel %vm499, %v476, 0
        %v510 = vsel %vm499, %v477, 0
        %512 = vmatprep.subr.mxu0 %v471
        %513 = vmatpush1.msra.mxu0 %v470
        %514 = vmatprep.subr.mxu0 %v504
        %515 = vmatpush1.msra.mxu0 %v501
        %516 = vmatprep.subr.mxu0 0.0
        %517 = vmatpush1.msra.mxu0 0.0
        %518 = vmatprep.subr.mxu0 0.0
        %519 = vmatpush1.msra.mxu0 0.0
        %520 = vmatprep.subr.mxu0 0.0
        %521 = vmatpush1.msra.mxu0 0.0
        %522 = vmatprep.subr.mxu0 0.0
        %523 = vmatpush1.msra.mxu0 0.0
        %524 = vmatprep.subr.mxu0 0.0
        %525 = vmatpush1.msra.mxu0 0.0
        %526 = vmatprep.subr.mxu0 0.0
        %527 = vmatpush1.msra.mxu0 0.0
        %528 = vmatprep.subr.mxu0 0.0
        %529 = vmatpush1.msra.mxu0 0.0
        %530 = vmatprep.subr.mxu0 0.0
        %531 = vmatpush1.msra.mxu0 0.0
        %532 = vmatprep.subr.mxu0 0.0
        %533 = vmatpush1.msra.mxu0 0.0
        %534 = vmatprep.subr.mxu0 0.0
        %535 = vmatpush1.msra.mxu0 0.0
        %536 = vmatprep.subr.mxu0 0.0
        %537 = vmatpush1.msra.mxu0 0.0
        %538 = vmatprep.subr.mxu0 0.0
        %539 = vmatpush1.msra.mxu0 0.0
        %540 = vmatprep.subr.mxu0 0.0
        %541 = vmatpush1.msra.mxu0 0.0
        %542 = vmatprep.subr.mxu0 0.0
        %543 = vmatpush1.msra.mxu0 0.0
        %544 = vmatprep.subr.mxu0 0.0
        %545 = vmatpush1.msra.mxu0 0.0
        %546 = vmatprep.subr.mxu0 0.0
        %547 = vmatpush1.msra.mxu0 0.0
        %548 = vmatprep.subr.mxu0 0.0
        %549 = vmatpush1.msra.mxu0 0.0
        %550 = vmatprep.subr.mxu0 0.0
        %551 = vmatpush1.msra.mxu0 0.0
        %552 = vmatprep.subr.mxu0 0.0
        %553 = vmatpush1.msra.mxu0 0.0
        %554 = vmatprep.subr.mxu0 0.0
        %555 = vmatpush1.msra.mxu0 0.0
        %556 = vmatprep.subr.mxu0 0.0
        %557 = vmatpush1.msra.mxu0 0.0
        %558 = vmatprep.subr.mxu0 0.0
        %559 = vmatpush1.msra.mxu0 0.0
        %560 = vmatprep.subr.mxu0 0.0
        %561 = vmatpush1.msra.mxu0 0.0
        %562 = vmatprep.subr.mxu0 0.0
        %563 = vmatpush1.msra.mxu0 0.0
        %564 = vmatprep.subr.mxu0 0.0
        %565 = vmatpush1.msra.mxu0 0.0
        %566 = vmatprep.subr.mxu0 0.0
        %567 = vmatpush1.msra.mxu0 0.0
        %568 = vmatprep.subr.mxu0 0.0
        %569 = vmatpush1.msra.mxu0 0.0
        %570 = vmatprep.subr.mxu0 0.0
        %571 = vmatpush1.msra.mxu0 0.0
        %572 = vmatprep.subr.mxu0 0.0
        %573 = vmatpush1.msra.mxu0 0.0
        %574 = vmatprep.subr.mxu0 0.0
        %575 = vmatpush1.msra.mxu0 0.0
        %576 = vmatprep.mubr.f32.mxu0 0.0
        %577 = vmatmul.mubr.f32.gmra.mrb[0].mxu0 %v494
        %v578 = vpop.f32.mrb[0].mxu0
        %v579 = vadd.f32 %v485, %v578
        %v580 = vpop.f32.mrb[0].mxu0
        %v581 = vadd.f32 %v485, %v580
        %582 = vmatprep.mubr.f32.mxu0 0.0
        %583 = vmatmul.mubr.f32.gmra.mrb[0].mxu0 %v497
        %v584 = vpop.f32.mrb[0].mxu0
        %v585 = vadd.f32 %v490, %v584
        %v586 = vpop.f32.mrb[0].mxu0
        %v587 = vadd.f32 %v490, %v586
        %588 = vdwg.mxu0
        %589 = vmatprep.subr.mxu0 %v473
        %590 = vmatpush1.msra.mxu0 %v472
        %591 = vmatprep.subr.mxu0 %v510
        %592 = vmatpush1.msra.mxu0 %v507
        %593 = vmatprep.subr.mxu0 0.0
        %594 = vmatpush1.msra.mxu0 0.0
        %595 = vmatprep.subr.mxu0 0.0
        %596 = vmatpush1.msra.mxu0 0.0
        %597 = vmatprep.subr.mxu0 0.0
        %598 = vmatpush1.msra.mxu0 0.0
        %599 = vmatprep.subr.mxu0 0.0
        %600 = vmatpush1.msra.mxu0 0.0
        %601 = vmatprep.subr.mxu0 0.0
        %602 = vmatpush1.msra.mxu0 0.0
        %603 = vmatprep.subr.mxu0 0.0
        %604 = vmatpush1.msra.mxu0 0.0
        %605 = vmatprep.subr.mxu0 0.0
        %606 = vmatpush1.msra.mxu0 0.0
        %607 = vmatprep.subr.mxu0 0.0
        %608 = vmatpush1.msra.mxu0 0.0
        %609 = vmatprep.subr.mxu0 0.0
        %610 = vmatpush1.msra.mxu0 0.0
        %611 = vmatprep.subr.mxu0 0.0
        %612 = vmatpush1.msra.mxu0 0.0
        %613 = vmatprep.subr.mxu0 0.0
        %614 = vmatpush1.msra.mxu0 0.0
        %615 = vmatprep.subr.mxu0 0.0
        %616 = vmatpush1.msra.mxu0 0.0
        %617 = vmatprep.subr.mxu0 0.0
        %618 = vmatpush1.msra.mxu0 0.0
        %619 = vmatprep.subr.mxu0 0.0
        %620 = vmatpush1.msra.mxu0 0.0
        %621 = vmatprep.subr.mxu0 0.0
        %622 = vmatpush1.msra.mxu0 0.0
        %623 = vmatprep.subr.mxu0 0.0
        %624 = vmatpush1.msra.mxu0 0.0
        %625 = vmatprep.subr.mxu0 0.0
        %626 = vmatpush1.msra.mxu0 0.0
        %627 = vmatprep.subr.mxu0 0.0
        %628 = vmatpush1.msra.mxu0 0.0
        %629 = vmatprep.subr.mxu0 0.0
        %630 = vmatpush1.msra.mxu0 0.0
        %631 = vmatprep.subr.mxu0 0.0
        %632 = vmatpush1.msra.mxu0 0.0
        %633 = vmatprep.subr.mxu0 0.0
        %634 = vmatpush1.msra.mxu0 0.0
        %635 = vmatprep.subr.mxu0 0.0
        %636 = vmatpush1.msra.mxu0 0.0
        %637 = vmatprep.subr.mxu0 0.0
        %638 = vmatpush1.msra.mxu0 0.0
        %639 = vmatprep.subr.mxu0 0.0
        %640 = vmatpush1.msra.mxu0 0.0
        %641 = vmatprep.subr.mxu0 0.0
        %642 = vmatpush1.msra.mxu0 0.0
        %643 = vmatprep.subr.mxu0 0.0
        %644 = vmatpush1.msra.mxu0 0.0
        %645 = vmatprep.subr.mxu0 0.0
        %646 = vmatpush1.msra.mxu0 0.0
        %647 = vmatprep.subr.mxu0 0.0
        %648 = vmatpush1.msra.mxu0 0.0
        %649 = vmatprep.subr.mxu0 0.0
        %650 = vmatpush1.msra.mxu0 0.0
        %651 = vmatprep.subr.mxu0 0.0
        %652 = vmatpush1.msra.mxu0 0.0
        %653 = vmatprep.mubr.f32.mxu0 0.0
        %654 = vmatmul.mubr.f32.gmra.mrb[0].mxu0 %v494
        %v655 = vpop.f32.mrb[0].mxu0
        %v656 = vadd.f32 %v485, %v655
        %v657 = vpop.f32.mrb[0].mxu0
        %v658 = vadd.f32 %v485, %v657
        %659 = vmatprep.mubr.f32.mxu0 0.0
        %660 = vmatmul.mubr.f32.gmra.mrb[0].mxu0 %v497
        %v661 = vpop.f32.mrb[0].mxu0
        %v662 = vadd.f32 %v490, %v661
        %v663 = vpop.f32.mrb[0].mxu0
        %v664 = vadd.f32 %v490, %v663
        %665 = vdwg.mxu0
        %v666 = vmax.f32 %v579, 0.0
        %v667 = vmax.f32 %v581, 0.0
        %v668 = vmax.f32 %v656, 0.0
        %v669 = vmax.f32 %v658, 0.0
        %v670 = vmax.f32 %v585, 0.0
        %v671 = vmax.f32 %v587, 0.0
        %v672 = vmax.f32 %v662, 0.0
        %v673 = vmax.f32 %v664, 0.0
        %v674 = vld [vmem:[%s5] sm:$0x3]
        %v675 = vld [vmem:[%s6] sm:$0x3]
        %677 = vset.pattern.permute.xlu0 0
        %678 = vperm.xlu0 %677, %v675
        %v679 = vpop.permute.xlu0 %678
        %v682 = vsel %vm492, %v674, 0
        %v685 = vsel %vm499, %v670, 0
        %v688 = vsel %vm499, %v671, 0
        %v691 = vsel %vm499, %v672, 0
        %v694 = vsel %vm499, %v673, 0
        %696 = vmatprep.subr.mxu0 %v667
        %697 = vmatpush1.msra.mxu0 %v666
        %698 = vmatprep.subr.mxu0 %v688
        %699 = vmatpush1.msra.mxu0 %v685
        %700 = vmatprep.subr.mxu0 0.0
        %701 = vmatpush1.msra.mxu0 0.0
        %702 = vmatprep.subr.mxu0 0.0
        %703 = vmatpush1.msra.mxu0 0.0
        %704 = vmatprep.subr.mxu0 0.0
        %705 = vmatpush1.msra.mxu0 0.0
        %706 = vmatprep.subr.mxu0 0.0
        %707 = vmatpush1.msra.mxu0 0.0
        %708 = vmatprep.subr.mxu0 0.0
        %709 = vmatpush1.msra.mxu0 0.0
        %710 = vmatprep.subr.mxu0 0.0
        %711 = vmatpush1.msra.mxu0 0.0
        %712 = vmatprep.subr.mxu0 0.0
        %713 = vmatpush1.msra.mxu0 0.0
        %714 = vmatprep.subr.mxu0 0.0
        %715 = vmatpush1.msra.mxu0 0.0
        %716 = vmatprep.subr.mxu0 0.0
        %717 = vmatpush1.msra.mxu0 0.0
        %718 = vmatprep.subr.mxu0 0.0
        %719 = vmatpush1.msra.mxu0 0.0
        %720 = vmatprep.subr.mxu0 0.0
        %721 = vmatpush1.msra.mxu0 0.0
        %722 = vmatprep.subr.mxu0 0.0
        %723 = vmatpush1.msra.mxu0 0.0
        %724 = vmatprep.subr.mxu0 0.0
        %725 = vmatpush1.msra.mxu0 0.0
        %726 = vmatprep.subr.mxu0 0.0
        %727 = vmatpush1.msra.mxu0 0.0
        %728 = vmatprep.subr.mxu0 0.0
        %729 = vmatpush1.msra.mxu0 0.0
        %730 = vmatprep.subr.mxu0 0.0
        %731 = vmatpush1.msra.mxu0 0.0
        %732 = vmatprep.subr.mxu0 0.0
        %733 = vmatpush1.msra.mxu0 0.0
        %734 = vmatprep.subr.mxu0 0.0
        %735 = vmatpush1.msra.mxu0 0.0
        %736 = vmatprep.subr.mxu0 0.0
        %737 = vmatpush1.msra.mxu0 0.0
        %738 = vmatprep.subr.mxu0 0.0
        %739 = vmatpush1.msra.mxu0 0.0
        %740 = vmatprep.subr.mxu0 0.0
        %741 = vmatpush1.msra.mxu0 0.0
        %742 = vmatprep.subr.mxu0 0.0
        %743 = vmatpush1.msra.mxu0 0.0
        %744 = vmatprep.subr.mxu0 0.0
        %745 = vmatpush1.msra.mxu0 0.0
        %746 = vmatprep.subr.mxu0 0.0
        %747 = vmatpush1.msra.mxu0 0.0
        %748 = vmatprep.subr.mxu0 0.0
        %749 = vmatpush1.msra.mxu0 0.0
        %750 = vmatprep.subr.mxu0 0.0
        %751 = vmatpush1.msra.mxu0 0.0
        %752 = vmatprep.subr.mxu0 0.0
        %753 = vmatpush1.msra.mxu0 0.0
        %754 = vmatprep.subr.mxu0 0.0
        %755 = vmatpush1.msra.mxu0 0.0
        %756 = vmatprep.subr.mxu0 0.0
        %757 = vmatpush1.msra.mxu0 0.0
        %758 = vmatprep.subr.mxu0 0.0
        %759 = vmatpush1.msra.mxu0 0.0
        %760 = vmatprep.mubr.f32.mxu0 0.0
        %761 = vmatmul.mubr.f32.gmra.mrb[0].mxu0 %v682
        %v762 = vpop.f32.mrb[0].mxu0
        %v763 = vadd.f32 %v679, %v762
        %v764 = vpop.f32.mrb[0].mxu0
        %v765 = vadd.f32 %v679, %v764
        %766 = vdwg.mxu0
        %767 = vmatprep.subr.mxu0 %v669
        %768 = vmatpush1.msra.mxu0 %v668
        %769 = vmatprep.subr.mxu0 %v694
        %770 = vmatpush1.msra.mxu0 %v691
        %771 = vmatprep.subr.mxu0 0.0
        %772 = vmatpush1.msra.mxu0 0.0
        %773 = vmatprep.subr.mxu0 0.0
        %774 = vmatpush1.msra.mxu0 0.0
        %775 = vmatprep.subr.mxu0 0.0
        %776 = vmatpush1.msra.mxu0 0.0
        %777 = vmatprep.subr.mxu0 0.0
        %778 = vmatpush1.msra.mxu0 0.0
        %779 = vmatprep.subr.mxu0 0.0
        %780 = vmatpush1.msra.mxu0 0.0
        %781 = vmatprep.subr.mxu0 0.0
        %782 = vmatpush1.msra.mxu0 0.0
        %783 = vmatprep.subr.mxu0 0.0
        %784 = vmatpush1.msra.mxu0 0.0
        %785 = vmatprep.subr.mxu0 0.0
        %786 = vmatpush1.msra.mxu0 0.0
        %787 = vmatprep.subr.mxu0 0.0
        %788 = vmatpush1.msra.mxu0 0.0
        %789 = vmatprep.subr.mxu0 0.0
        %790 = vmatpush1.msra.mxu0 0.0
        %791 = vmatprep.subr.mxu0 0.0
        %792 = vmatpush1.msra.mxu0 0.0
        %793 = vmatprep.subr.mxu0 0.0
        %794 = vmatpush1.msra.mxu0 0.0
        %795 = vmatprep.subr.mxu0 0.0
        %796 = vmatpush1.msra.mxu0 0.0
        %797 = vmatprep.subr.mxu0 0.0
        %798 = vmatpush1.msra.mxu0 0.0
        %799 = vmatprep.subr.mxu0 0.0
        %800 = vmatpush1.msra.mxu0 0.0
        %801 = vmatprep.subr.mxu0 0.0
        %802 = vmatpush1.msra.mxu0 0.0
        %803 = vmatprep.subr.mxu0 0.0
        %804 = vmatpush1.msra.mxu0 0.0
        %805 = vmatprep.subr.mxu0 0.0
        %806 = vmatpush1.msra.mxu0 0.0
        %807 = vmatprep.subr.mxu0 0.0
        %808 = vmatpush1.msra.mxu0 0.0
        %809 = vmatprep.subr.mxu0 0.0
        %810 = vmatpush1.msra.mxu0 0.0
        %811 = vmatprep.subr.mxu0 0.0
        %812 = vmatpush1.msra.mxu0 0.0
        %813 = vmatprep.subr.mxu0 0.0
        %814 = vmatpush1.msra.mxu0 0.0
        %815 = vmatprep.subr.mxu0 0.0
        %816 = vmatpush1.msra.mxu0 0.0
        %817 = vmatprep.subr.mxu0 0.0
        %818 = vmatpush1.msra.mxu0 0.0
        %819 = vmatprep.subr.mxu0 0.0
        %820 = vmatpush1.msra.mxu0 0.0
        %821 = vmatprep.subr.mxu0 0.0
        %822 = vmatpush1.msra.mxu0 0.0
        %823 = vmatprep.subr.mxu0 0.0
        %824 = vmatpush1.msra.mxu0 0.0
        %825 = vmatprep.subr.mxu0 0.0
        %826 = vmatpush1.msra.mxu0 0.0
        %827 = vmatprep.subr.mxu0 0.0
        %828 = vmatpush1.msra.mxu0 0.0
        %829 = vmatprep.subr.mxu0 0.0
        %830 = vmatpush1.msra.mxu0 0.0
        %831 = vmatprep.mubr.f32.mxu0 0.0
        %832 = vmatmul.mubr.f32.gmra.mrb[0].mxu0 %v682
        %v833 = vpop.f32.mrb[0].mxu0
        %v834 = vadd.f32 %v679, %v833
        %v835 = vpop.f32.mrb[0].mxu0
        %v836 = vadd.f32 %v679, %v835
        %837 = vdwg.mxu0
        %v842 = vcombine.low %v763, %v765
        %v843 = vcombine.low %v834, %v836
        %v845 = vunpack.c.l.s4 1983009808
        %v846 = vunpack.c.0.s8 %v845
        %v847 = vlaneseq
        %v848 = vshrl.u32 %v847, 7
        %v849 = vsub.s32 %v846, %v848
        %v850 = vrot.slane %v842, %v849
        %v852 = vunpack.c.l.s4 1983009808
        %v853 = vunpack.c.0.s8 %v852
        %v854 = vlaneseq
        %v855 = vshrl.u32 %v854, 7
        %v856 = vsub.s32 %v853, %v855
        %v857 = vrot.slane %v843, %v856
        %v858 = vcombine.low %v850, %v857
        %860 = vst [vmem:[%s272] sm:$0xff] %v858
        %s861 = sand.u32 %s181, 1
        %s862 = scalar_lea.sflag [#allocation3], %s861
        %s863 = sand.u32 %s181, 1
        %s864 = smul.addr %s863, 8
        %s865 = scalar_lea.vmem [#allocation2], %s864
        // Predicated region
        $region49: #{tpu_custom_call.1} parent=47 // pred_check
          %p866 = pneg %p191
        $region50: #{tpu_custom_call.1} parent=47 // pred_check_branch
          %868 = sbr.rel (%p866) target = $region52
        $region51: #{tpu_custom_call.1} parent=47 // pred_region
          %s869 = smul.u32 4, %s21
          %s871 = ssub.s32 128, 128
          %872 = vsyncadd %s862, %s871
          %s873 = smul.addr %s869, 32
          %s874 = scalar_lea.hbm %s7, %s873
          %s876 = sshll.u32 %s865, 4
          %s877 = int_to_ptr.vmem [resolvable:$true] %s876
          %879 = dma.vmem_to_hbm [thread:$0]  %s877, 128, %s874, %s862
        $region52: #{tpu_custom_call.1} parent=47 // pred_fallthru
          _
      $region48: #{tpu_custom_call.1} parent=5 // pred_fallthru
        _
      %p880 = scmp.le.s32.totalorder 2, %s16
      // Predicated region
      $region53: #{tpu_custom_call.1} parent=5 // pred_check
        %p881 = pneg %p880
      $region54: #{tpu_custom_call.1} parent=5 // pred_check_branch
        %883 = sbr.rel (%p881) target = $region56
      $region55: #{tpu_custom_call.1} parent=5 // pred_region
        %s884 = ssub.s32 %s16, 2
        // Predicated region
        $region57: #{tpu_custom_call.1} parent=55 // pred_check
          %p885 = pneg %p197
        $region58: #{tpu_custom_call.1} parent=55 // pred_check_branch
          %887 = sbr.rel (%p885) target = $region60
        $region59: #{tpu_custom_call.1} parent=55 // pred_region
          %s888 = sand.u32 %s182, 1
          %s889 = scalar_lea.sflag [#allocation3], %s888
          %s890 = sand.u32 %s182, 1
          %s891 = smul.addr %s890, 8
          %s892 = scalar_lea.vmem [#allocation2], %s891
          %893 = dma.done %s889, 128
        $region60: #{tpu_custom_call.1} parent=55 // pred_fallthru
          _
      $region56: #{tpu_custom_call.1} parent=5 // pred_fallthru
        _
    $region6: #{tpu_custom_call.1} parent=1 // loop_footer
      %s20 = sadd.s32 1, %s16
    $region7: #{tpu_custom_call.1} parent=1 // loop_footer_branch
      %15 = sbr.rel target = $region3
    $region8: #{tpu_custom_call.1} parent=1 // loop_exit
      _
    %894 = vsyncpa [#allocation3], 1
    %s895 = scalar_lea.sflag [#allocation3], 1
    %896 = vsyncpa %s895, 1

</llo_original>
